<compile_context>
chip_gen: v7x
topology: tpu7x:2x2x1
jax: 0.10.0
libtpu: 0.0.40
codegen_flags: <defaults>
</compile_context>

<pallas_src>
import functools

import jax
import jax.numpy as jnp
from jax import lax
from jax.experimental import pallas as pl
from jax.experimental.pallas import tpu as pltpu


# ---------------------------------------------------------------------------
# Kernel
# ---------------------------------------------------------------------------
def _basic_block1_kernel(xcol_ref, w_ref, b_ref, g_ref, bt_ref, o_ref, *,
                         bn, activation, n_win, eps):
    # xcol_ref : (K, M)    f32  im2col columns, pool-window-major ordering
    # w_ref    : (Co, K)   f32  conv weight as a matrix (rows = out channels)
    # b_ref    : (Co, 1)   f32  conv bias
    # g_ref    : (Co, 1)   f32  BN gamma
    # bt_ref   : (Co, 1)   f32  BN beta
    # o_ref    : (Co, Np)  f32  pooled output, Np = N*Hp*Wp
    M = xcol_ref.shape[1]          # total number of conv output positions (N*Ho*Wo)
    n_pool = o_ref.shape[1]        # pooled positions per window offset (N*Hp*Wp)

    # ---- Conv2d as one MXU contraction -> lane-dense (Co, M) slab ----
    conv = jnp.dot(w_ref[...], xcol_ref[...], preferred_element_type=jnp.float32)
    conv = conv + b_ref[...]                                   # (Co,1) broadcast over lanes

    # ---- BatchNorm2d: training-mode batch stats, single pass, biased variance ----
    if bn:
        inv_m = 1.0 / M
        mean = jnp.sum(conv, axis=1, keepdims=True) * inv_m            # (Co,1)
        mean_sq = jnp.sum(conv * conv, axis=1, keepdims=True) * inv_m  # (Co,1)
        inv_std = lax.rsqrt(mean_sq - mean * mean + eps)
        scale = g_ref[...] * inv_std                                   # (Co,1)
        shift = bt_ref[...] - mean * scale                             # (Co,1)
        conv = conv * scale + shift                                    # one FMA over the slab

    # ---- Activation ----
    if activation == 'relu':
        act = jnp.maximum(conv, 0.0)
    else:  # 'lrelu' (PyTorch default negative_slope = 0.01)
        act = jnp.where(conv >= 0.0, conv, 0.01 * conv)

    # ---- MaxPool2d: window offsets are the slowest-varying column index, so pooling is an
    #      elementwise max over n_win contiguous lane chunks of width n_pool ----
    pooled = act[:, 0:n_pool]
    for q in range(1, n_win):
        pooled = jnp.maximum(pooled, act[:, q * n_pool:(q + 1) * n_pool])

    o_ref[...] = pooled.astype(o_ref.dtype)                    # single full-block store


# ---------------------------------------------------------------------------
# Wrapper
# ---------------------------------------------------------------------------
def _im2col_pool_ordered(x, kernel_size, stride, dilation, mp_size):
    """im2col with pool-window-major column ordering (layout plumbing done by XLA in HBM).

    Returns (xcol, (N, Ho, Wo, Hp, Wp)) where xcol has shape (KH*KW*Cin, N*Ho*Wo):
      rows ordered (kh, kw, ci);
      the first ph*pw*N*Hp*Wp columns are ordered (win_i, win_j, n, hp, wp);
      any conv positions dropped by floor-mode pooling are appended as trailing columns
      (needed only for BatchNorm statistics).
    """
    N, Cin, H, W = x.shape
    KH, KW = kernel_size
    sh, sw = stride
    dh, dw = dilation
    ph, pw = mp_size
    Ho = (H - (KH - 1) * dh - 1) // sh + 1
    Wo = (W - (KW - 1) * dw - 1) // sw + 1
    Hp, Wp = Ho // ph, Wo // pw
    Hc, Wc = Hp * ph, Wp * pw                       # region covered by pooling windows

    patches = []
    for kh in range(KH):
        for kw in range(KW):
            h0, w0 = kh * dh, kw * dw
            p = lax.slice(x, (0, 0, h0, w0),
                          (N, Cin, h0 + (Ho - 1) * sh + 1, w0 + (Wo - 1) * sw + 1),
                          (1, 1, sh, sw))           # (N, Cin, Ho, Wo)
            patches.append(p)
    KK = KH * KW
    P = jnp.stack(patches, axis=0)                  # (KK, N, Cin, Ho, Wo)
    P = jnp.transpose(P, (0, 2, 1, 3, 4))           # (KK, Cin, N, Ho, Wo)

    cov = P[:, :, :, :Hc, :Wc].reshape(KK, Cin, N, Hp, ph, Wp, pw)
    cov = jnp.transpose(cov, (0, 1, 4, 6, 2, 3, 5)) # (KK, Cin, ph, pw, N, Hp, Wp)
    cols = [cov.reshape(KK * Cin, ph * pw * N * Hp * Wp)]
    if Wc < Wo:                                     # right strip (all rows), BN-only columns
        cols.append(P[:, :, :, :, Wc:].reshape(KK * Cin, -1))
    if Hc < Ho:                                     # bottom strip (covered cols), BN-only
        cols.append(P[:, :, :, Hc:, :Wc].reshape(KK * Cin, -1))
    xcol = jnp.concatenate(cols, axis=1) if len(cols) > 1 else cols[0]
    return xcol, (N, Ho, Wo, Hp, Wp)


def basic_block1_forward(x_nchw, w_oihw, bias, gamma, beta, *, bn, activation,
                         mp_size, kernel_size, dilation, stride, eps=1e-5):
    """Pallas implementation of BasicBlock1.forward.  Input/output are NCHW like PyTorch."""
    x = x_nchw.astype(jnp.float32)
    Co, Cin, KH, KW = w_oihw.shape
    ph, pw = mp_size

    xcol, (N, Ho, Wo, Hp, Wp) = _im2col_pool_ordered(
        x, kernel_size, stride, dilation, mp_size)
    # Weight matrix with rows matching xcol's (kh, kw, ci) row ordering.
    w_mat = jnp.transpose(w_oihw, (0, 2, 3, 1)).reshape(Co, KH * KW * Cin).astype(jnp.float32)

    kernel = functools.partial(
        _basic_block1_kernel, bn=bn, activation=activation, n_win=ph * pw, eps=eps)
    vmem = pl.BlockSpec(memory_space=pltpu.MemorySpace.VMEM)

    out = pl.pallas_call(
        kernel,
        out_shape=jax.ShapeDtypeStruct((Co, N * Hp * Wp), jnp.float32),
        in_specs=[vmem] * 5,
        out_specs=vmem,
    )(xcol, w_mat,
      bias.reshape(Co, 1).astype(jnp.float32),
      gamma.reshape(Co, 1).astype(jnp.float32),
      beta.reshape(Co, 1).astype(jnp.float32))

    # (Co, N*Hp*Wp) -> (N, Co, Hp, Wp); tiny (<= a few KB).
    return jnp.transpose(out.reshape(Co, N, Hp, Wp), (1, 0, 2, 3))


# ---------------------------------------------------------------------------
# Pure-JAX reference (mirrors PyTorch semantics: training-mode BN, floor-mode maxpool)
# ---------------------------------------------------------------------------
def _reference(x_nchw, w_oihw, bias, gamma, beta, *, bn, activation, mp_size,
               dilation, stride, eps=1e-5):
    y = lax.conv_general_dilated(
        x_nchw, w_oihw, window_strides=stride, padding='VALID',
        rhs_dilation=dilation, dimension_numbers=('NCHW', 'OIHW', 'NCHW'))
    y = y + bias.reshape(1, -1, 1, 1)
    if bn:
        mean = jnp.mean(y, axis=(0, 2, 3), keepdims=True)
        var = jnp.mean(jnp.square(y - mean), axis=(0, 2, 3), keepdims=True)
        y = (y - mean) / jnp.sqrt(var + eps)
        y = y * gamma.reshape(1, -1, 1, 1) + beta.reshape(1, -1, 1, 1)
    if activation == 'relu':
        y = jnp.maximum(y, 0.0)
    else:
        y = jnp.where(y >= 0.0, y, 0.01 * y)
    ph, pw = mp_size
    return lax.reduce_window(y, -jnp.inf, lax.max,
                             (1, 1, ph, pw), (1, 1, ph, pw), 'VALID')


if __name__ == "__main__":
    in_ch, out_ch = 4, 8

    key = jax.random.PRNGKey(0)
    k_x, k_w, k_b = jax.random.split(key, 3)
    x = jax.random.normal(k_x, (2, in_ch, 16, 16), jnp.float32)

    fan_in = in_ch * 3 * 3
    bound = 1.0 / (fan_in ** 0.5)
    w = jax.random.uniform(k_w, (out_ch, in_ch, 3, 3), jnp.float32, -bound, bound)
    b = jax.random.uniform(k_b, (out_ch,), jnp.float32, -bound, bound)
    gamma = jnp.ones((out_ch,), jnp.float32)
    beta = jnp.zeros((out_ch,), jnp.float32)

    configs = [
        # The canonical BasicBlock1(4, 8, bn=True, 'relu', (2,2), (3,3), (1,1), (1,1))
        dict(bn=True, activation='relu', mp_size=(2, 2), kernel_size=(3, 3),
             dilation=(1, 1), stride=(1, 1)),
        # Exercises lrelu, bn=False and floor-mode pooling with dropped rows/cols.
        dict(bn=False, activation='lrelu', mp_size=(2, 2), kernel_size=(3, 3),
             dilation=(1, 1), stride=(2, 2)),
    ]

    for cfg in configs:
        out = basic_block1_forward(x, w, b, gamma, beta, **cfg)
        out = jax.block_until_ready(out)
        ref_cfg = {k: v for k, v in cfg.items() if k != 'kernel_size'}
        ref = _reference(x, w, b, gamma, beta, **ref_cfg)
        assert out.shape == ref.shape, (out.shape, ref.shape)
        err = float(jnp.max(jnp.abs(out - ref)))
        assert jnp.allclose(out, ref, atol=1e-3, rtol=1e-3), err

    print("KERNEL_OK")
</pallas_src>

<mosaic_0001>
module attributes {stable_mosaic.version = 11 : i64} {
  func.func @_basic_block1_kernel(%arg0: memref<36x392xf32, #tpu.memory_space<vmem>>, %arg1: memref<8x36xf32, #tpu.memory_space<vmem>>, %arg2: memref<8x1xf32, #tpu.memory_space<vmem>>, %arg3: memref<8x1xf32, #tpu.memory_space<vmem>>, %arg4: memref<8x1xf32, #tpu.memory_space<vmem>>, %arg5: memref<8x98xf32, #tpu.memory_space<vmem>>) attributes {dimension_semantics = [], scalar_prefetch = 0 : i64, scratch_operands = 0 : i64, tpu.core_type = #tpu.core_type<tc>} {
    %c0 = arith.constant 0 : index
    %c0_0 = arith.constant 0 : index
    %0 = vector.load %arg1[%c0, %c0_0] : memref<8x36xf32, #tpu.memory_space<vmem>>, vector<8x36xf32>
    %c0_1 = arith.constant 0 : index
    %c0_2 = arith.constant 0 : index
    %1 = vector.load %arg0[%c0_1, %c0_2] : memref<36x392xf32, #tpu.memory_space<vmem>>, vector<36x392xf32>
    %cst = arith.constant dense<0.000000e+00> : vector<8x392xf32>
    %2 = tpu.matmul %0, %1, %cst {dimension_numbers = #tpu.dot_dimension_numbers<[1], [0], [0], [1], [0, 0, 1, 1], [], []>} : vector<8x36xf32>, vector<36x392xf32>, vector<8x392xf32> -> vector<8x392xf32>
    %c0_3 = arith.constant 0 : index
    %c0_4 = arith.constant 0 : index
    %3 = vector.load %arg2[%c0_3, %c0_4] : memref<8x1xf32, #tpu.memory_space<vmem>>, vector<8x1xf32>
    %4 = vector.broadcast %3 : vector<8x1xf32> to vector<8x392xf32>
    %5 = arith.addf %2, %4 : vector<8x392xf32>
    %cst_5 = arith.constant dense<0.000000e+00> : vector<8xf32>
    %6 = vector.multi_reduction <add>, %5, %cst_5 [1] : vector<8x392xf32> to vector<8xf32>
    %7 = vector.shape_cast %6 : vector<8xf32> to vector<8x1xf32>
    %cst_6 = arith.constant 0.00255102036 : f32
    %8 = vector.broadcast %cst_6 : f32 to vector<8x1xf32>
    %9 = arith.mulf %7, %8 : vector<8x1xf32>
    %10 = arith.mulf %5, %5 : vector<8x392xf32>
    %cst_7 = arith.constant dense<0.000000e+00> : vector<8xf32>
    %11 = vector.multi_reduction <add>, %10, %cst_7 [1] : vector<8x392xf32> to vector<8xf32>
    %12 = vector.shape_cast %11 : vector<8xf32> to vector<8x1xf32>
    %cst_8 = arith.constant 0.00255102036 : f32
    %13 = vector.broadcast %cst_8 : f32 to vector<8x1xf32>
    %14 = arith.mulf %12, %13 : vector<8x1xf32>
    %15 = arith.mulf %9, %9 : vector<8x1xf32>
    %16 = arith.subf %14, %15 : vector<8x1xf32>
    %cst_9 = arith.constant 9.99999974E-6 : f32
    %17 = vector.broadcast %cst_9 : f32 to vector<8x1xf32>
    %18 = arith.addf %16, %17 : vector<8x1xf32>
    %19 = math.rsqrt %18 : vector<8x1xf32>
    %c0_10 = arith.constant 0 : index
    %c0_11 = arith.constant 0 : index
    %20 = vector.load %arg3[%c0_10, %c0_11] : memref<8x1xf32, #tpu.memory_space<vmem>>, vector<8x1xf32>
    %21 = arith.mulf %20, %19 : vector<8x1xf32>
    %c0_12 = arith.constant 0 : index
    %c0_13 = arith.constant 0 : index
    %22 = vector.load %arg4[%c0_12, %c0_13] : memref<8x1xf32, #tpu.memory_space<vmem>>, vector<8x1xf32>
    %23 = arith.mulf %9, %21 : vector<8x1xf32>
    %24 = arith.subf %22, %23 : vector<8x1xf32>
    %25 = vector.broadcast %21 : vector<8x1xf32> to vector<8x392xf32>
    %26 = arith.mulf %5, %25 : vector<8x392xf32>
    %27 = vector.broadcast %24 : vector<8x1xf32> to vector<8x392xf32>
    %28 = arith.addf %26, %27 : vector<8x392xf32>
    %cst_14 = arith.constant 0.000000e+00 : f32
    %29 = vector.broadcast %cst_14 : f32 to vector<8x392xf32>
    %30 = arith.maximumf %28, %29 : vector<8x392xf32>
    %31 = vector.extract_strided_slice %30 {offsets = [0, 0], sizes = [8, 98], strides = [1, 1]} : vector<8x392xf32> to vector<8x98xf32>
    %32 = vector.extract_strided_slice %30 {offsets = [0, 98], sizes = [8, 98], strides = [1, 1]} : vector<8x392xf32> to vector<8x98xf32>
    %33 = arith.maximumf %31, %32 : vector<8x98xf32>
    %34 = vector.extract_strided_slice %30 {offsets = [0, 196], sizes = [8, 98], strides = [1, 1]} : vector<8x392xf32> to vector<8x98xf32>
    %35 = arith.maximumf %33, %34 : vector<8x98xf32>
    %36 = vector.extract_strided_slice %30 {offsets = [0, 294], sizes = [8, 98], strides = [1, 1]} : vector<8x392xf32> to vector<8x98xf32>
    %37 = arith.maximumf %35, %36 : vector<8x98xf32>
    %c0_15 = arith.constant 0 : index
    %c0_16 = arith.constant 0 : index
    %38 = vector.load %arg5[%c0_15, %c0_16] : memref<8x98xf32, #tpu.memory_space<vmem>>, vector<8x98xf32>
    tpu.vector_store %arg5[%c0_15, %c0_16], %37 {strides = array<i32>} : memref<8x98xf32, #tpu.memory_space<vmem>>, vector<8x98xf32>,
    return
  }
}

</mosaic_0001>

<llo_original>
// kernel: tpu_custom_call.1
$region0: #{tpu_custom_call.1}
  #allocation0 [shape = 'u32[]', space=smem, size = 0x4, offset = 0x4, fixed_abs, tag = 'smem constant byte address 0x4 - core index']
  #allocation1 [shape = 'u32[144,128]{1,0:T(1,128)}', space=vmem, size = 0x12000, scoped, tag = 'internal scratch']
  %s0 = inlined_call_operand.hbm [shape: f32[36,392], index: 0, kind: input, shape index: {}]
  %s1 = inlined_call_operand.vmem [shape: f32[8,36], index: 1, kind: input, shape index: {}]
  %s2 = inlined_call_operand.vmem [shape: f32[8,1], index: 2, kind: input, shape index: {}]
  %s3 = inlined_call_operand.vmem [shape: f32[8,1], index: 3, kind: input, shape index: {}]
  %s4 = inlined_call_operand.vmem [shape: f32[8,1], index: 4, kind: input, shape index: {}]
  %s5 = inlined_call_operand.hbm [shape: f32[8,98], index: 5, kind: output, shape index: {}]
  %s6 = sld [smem:[#allocation0]]
  $region34: #{tpu_custom_call.1} parent=0
    _
  %s8 = ssub.s32 1, %s6
  %s9 = scalar_select 0, %s8, %s6
  $region1: #{tpu_custom_call.1} parent=0
    #allocation2 [shape = 'u8[81920]{0}', space=vmem, size = 0x14000, scoped, tag = 'input window, operand 0, single buffered']
    #allocation3 [shape = 's32[1]{0}', space=sflag, size = 0x4, scoped, tag = 'scoped memory for tpu_custom_call.1']
    #allocation4 [shape = 's32[1]{0}', space=sflag, size = 0x4, scoped, tag = 'scoped memory for tpu_custom_call.1']
    #allocation5 [shape = 'u8[4096]{0}', space=vmem, size = 0x1000, scoped, tag = 'output window, operand 0, single buffered']
    %10 = vsyncpa [#allocation3], 0
    %11 = vsyncpa [#allocation4], 0
    // Predicated region
    $region2: #{tpu_custom_call.1} parent=1 // pred_check
      _
    $region3: #{tpu_custom_call.1} parent=1 // pred_check_branch
      %13 = sbr.rel (0) target = $region5
    $region4: #{tpu_custom_call.1} parent=1 // pred_region
      %s15 = ssub.s32 2560, 2560
      %16 = vsyncadd [#allocation3], %s15
      %s17 = sshll.u32 [#allocation2], 4
      %s18 = int_to_ptr.vmem [resolvable:$true] %s17
      %23 = dma.hbm_to_vmem [thread:$0]  %s0, 2560, %s18, [#allocation3], 512, 512, 32
    $region5: #{tpu_custom_call.1} parent=1 // pred_fallthru
      _
    // Predicated region
    $region6: #{tpu_custom_call.1} parent=1 // pred_check
      _
    $region7: #{tpu_custom_call.1} parent=1 // pred_check_branch
      %25 = sbr.rel (0) target = $region9
    $region8: #{tpu_custom_call.1} parent=1 // pred_region
      _
    $region9: #{tpu_custom_call.1} parent=1 // pred_fallthru
      _
    // Predicated region
    $region10: #{tpu_custom_call.1} parent=1 // pred_check
      _
    $region11: #{tpu_custom_call.1} parent=1 // pred_check_branch
      %27 = sbr.rel (0) target = $region13
    $region12: #{tpu_custom_call.1} parent=1 // pred_region
      _
    $region13: #{tpu_custom_call.1} parent=1 // pred_fallthru
      _
    // Predicated region
    $region14: #{tpu_custom_call.1} parent=1 // pred_check
      _
    $region15: #{tpu_custom_call.1} parent=1 // pred_check_branch
      %29 = sbr.rel (0) target = $region17
    $region16: #{tpu_custom_call.1} parent=1 // pred_region
      _
    $region17: #{tpu_custom_call.1} parent=1 // pred_fallthru
      _
    // Predicated region
    $region18: #{tpu_custom_call.1} parent=1 // pred_check
      _
    $region19: #{tpu_custom_call.1} parent=1 // pred_check_branch
      %31 = sbr.rel (0) target = $region21
    $region20: #{tpu_custom_call.1} parent=1 // pred_region
      _
    $region21: #{tpu_custom_call.1} parent=1 // pred_fallthru
      _
    // Predicated region
    $region22: #{tpu_custom_call.1} parent=1 // pred_check
      _
    $region23: #{tpu_custom_call.1} parent=1 // pred_check_branch
      %33 = sbr.rel (0) target = $region25
    $region24: #{tpu_custom_call.1} parent=1 // pred_region
      %34 = dma.done [#allocation3], 2560
    $region25: #{tpu_custom_call.1} parent=1 // pred_fallthru
      _
    %v35 = vld [vmem:[%s1] sm:$0xff]
    %v36 = vld [vmem:[#allocation2] sm:$0xff]
    %v37 = vld [vmem:[#allocation2 + $0x8] sm:$0xff]
    %v38 = vld [vmem:[#allocation2 + $0x10] sm:$0xff]
    %v39 = vld [vmem:[#allocation2 + $0x18] sm:$0xff]
    %v40 = vld [vmem:[#allocation2 + $0x20] sm:$0xff]
    %v41 = vld [vmem:[#allocation2 + $0x28] sm:$0xff]
    %v42 = vld [vmem:[#allocation2 + $0x30] sm:$0xff]
    %v43 = vld [vmem:[#allocation2 + $0x38] sm:$0xff]
    %v44 = vld [vmem:[#allocation2 + $0x40] sm:$0xff]
    %v45 = vld [vmem:[#allocation2 + $0x48] sm:$0xff]
    %v46 = vld [vmem:[#allocation2 + $0x50] sm:$0xff]
    %v47 = vld [vmem:[#allocation2 + $0x58] sm:$0xff]
    %v48 = vld [vmem:[#allocation2 + $0x60] sm:$0xff]
    %v49 = vld [vmem:[#allocation2 + $0x68] sm:$0xff]
    %v50 = vld [vmem:[#allocation2 + $0x70] sm:$0xff]
    %v51 = vld [vmem:[#allocation2 + $0x78] sm:$0xff]
    %v52 = vld [vmem:[#allocation2 + $0x80] sm:$0xf]
    %v53 = vld [vmem:[#allocation2 + $0x88] sm:$0xf]
    %v54 = vld [vmem:[#allocation2 + $0x90] sm:$0xf]
    %v55 = vld [vmem:[#allocation2 + $0x98] sm:$0xf]
    %v56 = vld [vmem:[%s2] sm:$0xff]
    %58 = vset.pattern.permute.xlu0 0
    %59 = vperm.xlu0 %58, %v56
    %v60 = vpop.permute.xlu0 %59
    %vm62 = vcmask 293888
    %v64 = vsel %vm62, %v35, 0
    %vm66 = vcmask 1043456
    %v68 = vsel %vm66, %v52, 0
    %v71 = vsel %vm66, %v53, 0
    %v74 = vsel %vm66, %v54, 0
    %v77 = vsel %vm66, %v55, 0
    %79 = vmatprep.subr.mxu0 %v37
    %80 = vmatpush1.msra.mxu0 %v36
    %81 = vmatprep.subr.mxu0 %v41
    %82 = vmatpush1.msra.mxu0 %v40
    %83 = vmatprep.subr.mxu0 %v45
    %84 = vmatpush1.msra.mxu0 %v44
    %85 = vmatprep.subr.mxu0 %v49
    %86 = vmatpush1.msra.mxu0 %v48
    %87 = vmatprep.subr.mxu0 %v71
    %88 = vmatpush1.msra.mxu0 %v68
    %89 = vmatprep.subr.mxu0 0.0
    %90 = vmatpush1.msra.mxu0 0.0
    %91 = vmatprep.subr.mxu0 0.0
    %92 = vmatpush1.msra.mxu0 0.0
    %93 = vmatprep.subr.mxu0 0.0
    %94 = vmatpush1.msra.mxu0 0.0
    %95 = vmatprep.subr.mxu0 0.0
    %96 = vmatpush1.msra.mxu0 0.0
    %97 = vmatprep.subr.mxu0 0.0
    %98 = vmatpush1.msra.mxu0 0.0
    %99 = vmatprep.subr.mxu0 0.0
    %100 = vmatpush1.msra.mxu0 0.0
    %101 = vmatprep.subr.mxu0 0.0
    %102 = vmatpush1.msra.mxu0 0.0
    %103 = vmatprep.subr.mxu0 0.0
    %104 = vmatpush1.msra.mxu0 0.0
    %105 = vmatprep.subr.mxu0 0.0
    %106 = vmatpush1.msra.mxu0 0.0
    %107 = vmatprep.subr.mxu0 0.0
    %108 = vmatpush1.msra.mxu0 0.0
    %109 = vmatprep.subr.mxu0 0.0
    %110 = vmatpush1.msra.mxu0 0.0
    %111 = vmatprep.subr.mxu0 0.0
    %112 = vmatpush1.msra.mxu0 0.0
    %113 = vmatprep.subr.mxu0 0.0
    %114 = vmatpush1.msra.mxu0 0.0
    %115 = vmatprep.subr.mxu0 0.0
    %116 = vmatpush1.msra.mxu0 0.0
    %117 = vmatprep.subr.mxu0 0.0
    %118 = vmatpush1.msra.mxu0 0.0
    %119 = vmatprep.subr.mxu0 0.0
    %120 = vmatpush1.msra.mxu0 0.0
    %121 = vmatprep.subr.mxu0 0.0
    %122 = vmatpush1.msra.mxu0 0.0
    %123 = vmatprep.subr.mxu0 0.0
    %124 = vmatpush1.msra.mxu0 0.0
    %125 = vmatprep.subr.mxu0 0.0
    %126 = vmatpush1.msra.mxu0 0.0
    %127 = vmatprep.subr.mxu0 0.0
    %128 = vmatpush1.msra.mxu0 0.0
    %129 = vmatprep.subr.mxu0 0.0
    %130 = vmatpush1.msra.mxu0 0.0
    %131 = vmatprep.subr.mxu0 0.0
    %132 = vmatpush1.msra.mxu0 0.0
    %133 = vmatprep.subr.mxu0 0.0
    %134 = vmatpush1.msra.mxu0 0.0
    %135 = vmatprep.subr.mxu0 0.0
    %136 = vmatpush1.msra.mxu0 0.0
    %137 = vmatprep.subr.mxu0 0.0
    %138 = vmatpush1.msra.mxu0 0.0
    %139 = vmatprep.subr.mxu0 0.0
    %140 = vmatpush1.msra.mxu0 0.0
    %141 = vmatprep.subr.mxu0 0.0
    %142 = vmatpush1.msra.mxu0 0.0
    %143 = vmatprep.mubr.f32.mxu0 0.0
    %144 = vmatmul.mubr.f32.gmra.mrb[0].mxu0 %v64
    %v145 = vpop.f32.mrb[0].mxu0
    %v146 = vadd.f32 %v60, %v145
    %v147 = vpop.f32.mrb[0].mxu0
    %v148 = vadd.f32 %v60, %v147
    %149 = vdwg.mxu0
    %150 = vmatprep.subr.mxu0 %v39
    %151 = vmatpush1.msra.mxu0 %v38
    %152 = vmatprep.subr.mxu0 %v43
    %153 = vmatpush1.msra.mxu0 %v42
    %154 = vmatprep.subr.mxu0 %v47
    %155 = vmatpush1.msra.mxu0 %v46
    %156 = vmatprep.subr.mxu0 %v51
    %157 = vmatpush1.msra.mxu0 %v50
    %158 = vmatprep.subr.mxu0 %v77
    %159 = vmatpush1.msra.mxu0 %v74
    %160 = vmatprep.subr.mxu0 0.0
    %161 = vmatpush1.msra.mxu0 0.0
    %162 = vmatprep.subr.mxu0 0.0
    %163 = vmatpush1.msra.mxu0 0.0
    %164 = vmatprep.subr.mxu0 0.0
    %165 = vmatpush1.msra.mxu0 0.0
    %166 = vmatprep.subr.mxu0 0.0
    %167 = vmatpush1.msra.mxu0 0.0
    %168 = vmatprep.subr.mxu0 0.0
    %169 = vmatpush1.msra.mxu0 0.0
    %170 = vmatprep.subr.mxu0 0.0
    %171 = vmatpush1.msra.mxu0 0.0
    %172 = vmatprep.subr.mxu0 0.0
    %173 = vmatpush1.msra.mxu0 0.0
    %174 = vmatprep.subr.mxu0 0.0
    %175 = vmatpush1.msra.mxu0 0.0
    %176 = vmatprep.subr.mxu0 0.0
    %177 = vmatpush1.msra.mxu0 0.0
    %178 = vmatprep.subr.mxu0 0.0
    %179 = vmatpush1.msra.mxu0 0.0
    %180 = vmatprep.subr.mxu0 0.0
    %181 = vmatpush1.msra.mxu0 0.0
    %182 = vmatprep.subr.mxu0 0.0
    %183 = vmatpush1.msra.mxu0 0.0
    %184 = vmatprep.subr.mxu0 0.0
    %185 = vmatpush1.msra.mxu0 0.0
    %186 = vmatprep.subr.mxu0 0.0
    %187 = vmatpush1.msra.mxu0 0.0
    %188 = vmatprep.subr.mxu0 0.0
    %189 = vmatpush1.msra.mxu0 0.0
    %190 = vmatprep.subr.mxu0 0.0
    %191 = vmatpush1.msra.mxu0 0.0
    %192 = vmatprep.subr.mxu0 0.0
    %193 = vmatpush1.msra.mxu0 0.0
    %194 = vmatprep.subr.mxu0 0.0
    %195 = vmatpush1.msra.mxu0 0.0
    %196 = vmatprep.subr.mxu0 0.0
    %197 = vmatpush1.msra.mxu0 0.0
    %198 = vmatprep.subr.mxu0 0.0
    %199 = vmatpush1.msra.mxu0 0.0
    %200 = vmatprep.subr.mxu0 0.0
    %201 = vmatpush1.msra.mxu0 0.0
    %202 = vmatprep.subr.mxu0 0.0
    %203 = vmatpush1.msra.mxu0 0.0
    %204 = vmatprep.subr.mxu0 0.0
    %205 = vmatpush1.msra.mxu0 0.0
    %206 = vmatprep.subr.mxu0 0.0
    %207 = vmatpush1.msra.mxu0 0.0
    %208 = vmatprep.subr.mxu0 0.0
    %209 = vmatpush1.msra.mxu0 0.0
    %210 = vmatprep.subr.mxu0 0.0
    %211 = vmatpush1.msra.mxu0 0.0
    %212 = vmatprep.subr.mxu0 0.0
    %213 = vmatpush1.msra.mxu0 0.0
    %214 = vmatprep.mubr.f32.mxu0 0.0
    %215 = vmatmul.mubr.f32.gmra.mrb[0].mxu0 %v64
    %v216 = vpop.f32.mrb[0].mxu0
    %v217 = vadd.f32 %v60, %v216
    %v218 = vpop.f32.mrb[0].mxu0
    %v219 = vadd.f32 %v60, %v218
    %220 = vdwg.mxu0
    %v221 = vadd.f32 %v146, %v148
    %v222 = vadd.f32 %v221, %v217
    %vm223 = vcmask 64512
    %v224 = vsel %vm223, %v219, 0.0
    %v225 = vadd.f32 %v222, %v224
    %226 = vadd.xlane.f32.xlu0 %v225
    %v227 = vpop.xlane.xlu0 %226
    %v228 = vmul.f32 %v227, 0.0025510204
    %v229 = vmul.f32 %v146, %v146
    %v230 = vmul.f32 %v148, %v148
    %v231 = vmul.f32 %v217, %v217
    %v232 = vmul.f32 %v219, %v219
    %v233 = vadd.f32 %v229, %v230
    %v234 = vadd.f32 %v233, %v231
    %v235 = vsel %vm223, %v232, 0.0
    %v236 = vadd.f32 %v234, %v235
    %237 = vadd.xlane.f32.xlu0 %v236
    %v238 = vpop.xlane.xlu0 %237
    %v239 = vmul.f32 %v238, 0.0025510204
    %v240 = vmul.f32 %v228, %v228
    %v241 = vsub.f32 %v239, %v240
    %v242 = vadd.f32 %v241, 1e-05
    %v243 = vrsqrt.pop %v242
    %v244 = vld [vmem:[%s3] sm:$0xff]
    %v245 = vmul.f32 %v244, %v243
    %v246 = vld [vmem:[%s4] sm:$0xff]
    %v247 = vmul.f32 %v228, %v245
    %v248 = vsub.f32 %v246, %v247
    %250 = vset.pattern.permute.xlu0 0
    %251 = vperm.xlu0 %250, %v245
    %v252 = vpop.permute.xlu0 %251
    %v254 = vmul.f32 %v146, %v252
    %v255 = vmul.f32 %v148, %v252
    %v256 = vmul.f32 %v217, %v252
    %v257 = vmul.f32 %v219, %v252
    %259 = vset.pattern.permute.xlu0 0
    %260 = vperm.xlu0 %259, %v248
    %v261 = vpop.permute.xlu0 %260
    %v263 = vadd.f32 %v254, %v261
    %v264 = vadd.f32 %v255, %v261
    %v265 = vadd.f32 %v256, %v261
    %v266 = vadd.f32 %v257, %v261
    %v267 = vmax.f32 %v263, 0.0
    %v268 = vmax.f32 %v264, 0.0
    %v269 = vmax.f32 %v265, 0.0
    %v270 = vmax.f32 %v266, 0.0
    %273 = vrot.lane.b32.xlu0 %v267, 30
    %v274 = vpop.permute.xlu0 %273
    %275 = vrot.lane.b32.xlu0 %v268, 30
    %v276 = vpop.permute.xlu0 %275
    %vm277 = vcmask 244736
    %v278 = vsel %vm277, %v274, %v276
    %v280 = vmax.f32 %v267, %v278
    %282 = vrot.lane.b32.xlu0 %v268, 60
    %v283 = vpop.permute.xlu0 %282
    %284 = vrot.lane.b32.xlu0 %v269, 60
    %v285 = vpop.permute.xlu0 %284
    %vm286 = vcmask 490496
    %v287 = vsel %vm286, %v283, %v285
    %v289 = vmax.f32 %v280, %v287
    %291 = vrot.lane.b32.xlu0 %v269, 90
    %v292 = vpop.permute.xlu0 %291
    %293 = vrot.lane.b32.xlu0 %v270, 90
    %v294 = vpop.permute.xlu0 %293
    %vm295 = vcmask 736256
    %v296 = vsel %vm295, %v292, %v294
    %v298 = vmax.f32 %v289, %v296
    %vm299 = vcmask 801792
    %300 = vst.msk [vmem:[#allocation5] sm:$0xff] %vm299, %v298
    // Predicated region
    $region26: #{tpu_custom_call.1} parent=1 // pred_check
      _
    $region27: #{tpu_custom_call.1} parent=1 // pred_check_branch
      %302 = sbr.rel (0) target = $region29
    $region28: #{tpu_custom_call.1} parent=1 // pred_region
      %s304 = ssub.s32 128, 128
      %305 = vsyncadd [#allocation4], %s304
      %s307 = sshll.u32 [#allocation5], 4
      %s308 = int_to_ptr.vmem [resolvable:$true] %s307
      %310 = dma.vmem_to_hbm [thread:$0]  %s308, 128, %s5, [#allocation4]
    $region29: #{tpu_custom_call.1} parent=1 // pred_fallthru
      _
    // Predicated region
    $region30: #{tpu_custom_call.1} parent=1 // pred_check
      _
    $region31: #{tpu_custom_call.1} parent=1 // pred_check_branch
      %312 = sbr.rel (0) target = $region33
    $region32: #{tpu_custom_call.1} parent=1 // pred_region
      %313 = dma.done [#allocation4], 128
    $region33: #{tpu_custom_call.1} parent=1 // pred_fallthru
      _
    %314 = vsyncpa [#allocation3], 1
    %315 = vsyncpa [#allocation4], 1

</llo_original>
